<compile_context>
chip_gen: v6e
topology: v6e:2x2x1
jax: 0.10.0
libtpu: 0.0.40
codegen_flags: <defaults>
</compile_context>

<pallas_src>
import functools

import jax
import jax.numpy as jnp
import numpy as np
from jax.experimental import pallas as pl
from jax.experimental.pallas import tpu as pltpu

_LANES = 128
_MAX_TILE_ROWS = 2048        # 2048*128 px per grid step; multiple of 16 (bf16 packing)


def _aft_kernel(pred_ref, tgt_ref, tp_ref, fg_ref, pf_ref, fo_ref, *,
                n_s_split, tile_rows, n_full, n_blocks, total_rows, needs_mask):
    """One (core_split, batch, spatial_tile) step of the streaming reduction.

    pred_ref : (1, 2, tile_rows, 128) logits (native float dtype)
    tgt_ref  : (1, tile_rows, 128) integer labels (native int dtype)
    *_ref    : (1, 1, 1, 128) f32 partial-sum blocks, resident across the
               spatial grid axis (their BlockSpec index ignores `s`).
    """
    s = pl.program_id(2)

    @pl.when(s == 0)
    def _init():
        tp_ref[...] = jnp.zeros_like(tp_ref)
        fg_ref[...] = jnp.zeros_like(fg_ref)
        pf_ref[...] = jnp.zeros_like(pf_ref)
        fo_ref[...] = jnp.zeros_like(fo_ref)

    out_shape = tp_ref.shape             # (1, 1, 1, 128)

    def accumulate(valid):
        # Slice-then-cast: never materialize the full (2, tile, 128) f32 temp.
        margin = (pred_ref[0, 1].astype(jnp.float32)
                  - pred_ref[0, 0].astype(jnp.float32))          # fg - bg logit
        fg = tgt_ref[0] == 1
        if valid is not None:
            # Ragged tail: turn masked-off pixels into confidently-correct
            # background pixels so every term below is exactly zero there
            # (also neutralizes any garbage in the out-of-bounds rows).
            margin = jnp.where(valid, margin, -30.0)
            fg = jnp.logical_and(fg, valid)
        fg_f = fg.astype(jnp.float32)

        # Signed margin = logit(true class) - logit(other class).
        sm = jnp.where(fg, margin, -margin)
        # Exact, stable binary cross entropy: ce = -log_softmax[target].
        e = jnp.exp(-jnp.abs(sm))                  # in (0, 1], never overflows
        ce = jnp.maximum(-sm, 0.0) + jnp.log(1.0 + e)
        pt = jnp.exp(-ce)                          # prob. of the true class
        q = 1.0 - pt                               # prob. of the wrong class
        focal = q * q * ce                         # gamma = 2 -> explicit square
        p_fg = jnp.where(fg, pt, q)                # foreground probability

        # Cross-sublane partial sums accumulated as (1,128) lane vectors.
        tp_ref[...] += jnp.sum(p_fg * fg_f, axis=0, keepdims=True).reshape(out_shape)
        fg_ref[...] += jnp.sum(fg_f, axis=0, keepdims=True).reshape(out_shape)
        pf_ref[...] += jnp.sum(p_fg, axis=0, keepdims=True).reshape(out_shape)
        fo_ref[...] += jnp.sum(focal, axis=0, keepdims=True).reshape(out_shape)

    if needs_mask:
        g = pl.program_id(0) * n_s_split + s       # logical spatial tile index

        @pl.when(g < n_full)
        def _full_tile():                           # fully in-bounds: zero mask cost
            accumulate(None)

        @pl.when(jnp.logical_and(g >= n_full, g < n_blocks))
        def _ragged_tile():                         # the single partial tile
            row = jax.lax.broadcasted_iota(jnp.int32, (tile_rows, _LANES), 0)
            accumulate(g * tile_rows + row < total_rows)
        # g >= n_blocks (core-split padding tile): nothing to do; its input
        # block index is clamped to the previous one, so no new DMA is issued.
    else:
        accumulate(None)


def asymmetric_focal_tversky_loss(preds, targets, *, tversky_weight=0.5,
                                  focal_weight=0.5, delta=0.3, smooth=1e-6,
                                  max_tile_rows=_MAX_TILE_ROWS):
    """Forward pass of AsymmetricFocalTverskyLoss.

    preds:   (B, 2, H, W) float logits (f32 or bf16, streamed in native dtype)
    targets: (B, H, W) integer labels (int32 / int8 / uint8, native dtype)
    """
    B, C, H, W = preds.shape
    assert C == 2, "kernel implements the binary-segmentation module (C == 2)"
    # TODO(synk): general C>2 focal-CE path (full softmax over classes) not implemented.
    HW = H * W
    R = pl.cdiv(HW, _LANES)              # pixel rows of 128 lanes

    preds_flat = preds.reshape(B, C, HW)
    tgt_flat = targets.reshape(B, HW)

    lane_pad = R * _LANES - HW
    if lane_pad:
        # TODO(synk): H*W % 128 != 0 still costs one wrapper-side copy (the
        # (R,128) reshape needs it).  Pad pixels are confidently-correct
        # background, so they contribute exactly zero to every sum.
        pad_logits = jnp.concatenate(
            [jnp.zeros((B, 1, lane_pad), preds_flat.dtype),
             jnp.full((B, 1, lane_pad), -1e4, preds_flat.dtype)], axis=1)
        preds_flat = jnp.concatenate([preds_flat, pad_logits], axis=-1)
        tgt_flat = jnp.concatenate(
            [tgt_flat, jnp.zeros((B, lane_pad), tgt_flat.dtype)], axis=-1)

    preds_t = preds_flat.reshape(B, C, R, _LANES)
    tgt_t = tgt_flat.reshape(B, R, _LANES)

    # Spatial tiling: biggest tile that fits VMEM; tile row count is either the
    # full row count (any value allowed) or a multiple of 8 (f32 sublane tile).
    tile_rows = R if R <= max_tile_rows else max_tile_rows
    if B == 1 and tile_rows == R and R > 8:
        # Give the v7x core-split something to split even at batch size 1.
        tile_rows = (((R + 1) // 2 + 7) // 8) * 8
    n_blocks = pl.cdiv(R, tile_rows)     # spatial tiles actually covering data
    n_full = R // tile_rows              # tiles with no ragged tail
    n_split = 2 if n_blocks >= 2 else 1  # v7x: 2 TensorCores; harmless elsewhere
    n_s_split = pl.cdiv(n_blocks, n_split)
    needs_mask = (n_split * n_s_split) > n_full

    kernel = functools.partial(
        _aft_kernel, n_s_split=n_s_split, tile_rows=tile_rows, n_full=n_full,
        n_blocks=n_blocks, total_rows=R, needs_mask=needs_mask)

    def _pred_block(sp, b, s):
        return (b, 0, jnp.minimum(sp * n_s_split + s, n_blocks - 1), 0)

    def _tgt_block(sp, b, s):
        return (b, jnp.minimum(sp * n_s_split + s, n_blocks - 1), 0)

    acc_shape = jax.ShapeDtypeStruct((n_split, B, 1, _LANES), jnp.float32)
    acc_spec = pl.BlockSpec((1, 1, 1, _LANES), lambda sp, b, s: (sp, b, 0, 0))

    tp, fg_sum, pf_sum, fo_sum = pl.pallas_call(
        kernel,
        out_shape=(acc_shape,) * 4,
        grid_spec=pltpu.PrefetchScalarGridSpec(
            num_scalar_prefetch=0,
            grid=(n_split, B, n_s_split),
            in_specs=[
                pl.BlockSpec((1, C, tile_rows, _LANES), _pred_block),
                pl.BlockSpec((1, tile_rows, _LANES), _tgt_block),
            ],
            out_specs=(acc_spec,) * 4,
        ),
        compiler_params=pltpu.CompilerParams(
            dimension_semantics=("parallel", "parallel", "arbitrary"),
            vmem_limit_bytes=40 * 1024 * 1024),
    )(preds_t, tgt_t)

    # Tiny XLA epilogue: combine core-split partials, lane-reduce, finalize.
    tp = jnp.sum(tp, axis=(0, 2, 3))            # (B,)
    fg_sum = jnp.sum(fg_sum, axis=(0, 2, 3))
    pf_sum = jnp.sum(pf_sum, axis=(0, 2, 3))
    fo_sum = jnp.sum(fo_sum, axis=(0, 2, 3))

    fn = fg_sum - tp                             # sum(fg * (1 - p_fg))
    fp = pf_sum - tp                             # sum((1 - fg) * p_fg)
    tversky = (tp + smooth) / (tp + delta * fn + (1.0 - delta) * fp + smooth)
    loss = tversky_weight * (1.0 - tversky) + focal_weight * (fo_sum / HW)
    return jnp.mean(loss)


def _reference(preds, targets, *, tversky_weight=0.5, focal_weight=0.5,
               delta=0.3, smooth=1e-6, gamma=2.0):
    # Pure-JAX reference mirroring the PyTorch module, for validation.
    p = jax.nn.softmax(preds.astype(jnp.float32), axis=1)
    fg_p = p[:, 1]
    fg_t = (targets == 1).astype(jnp.float32)
    tp = jnp.sum(fg_p * fg_t, axis=(1, 2))
    fn = jnp.sum(fg_t * (1 - fg_p), axis=(1, 2))
    fp = jnp.sum((1 - fg_t) * fg_p, axis=(1, 2))
    tversky = (tp + smooth) / (tp + delta * fn + (1 - delta) * fp + smooth)
    tv_loss = 1 - tversky
    logp = jax.nn.log_softmax(preds.astype(jnp.float32), axis=1)
    ce = -jnp.take_along_axis(logp, targets[:, None].astype(jnp.int32),
                              axis=1)[:, 0]
    pt = jnp.exp(-ce)
    focal = (1 - pt) ** gamma * ce
    focal = focal.reshape(focal.shape[0], -1).mean(axis=1)
    return jnp.mean(tversky_weight * tv_loss + focal_weight * focal)


if __name__ == "__main__":
    key = jax.random.PRNGKey(0)
    k1, k2, k3, k4 = jax.random.split(key, 4)

    # Case 1: nominal small shape (lane-aligned, single tile, no masking).
    B, C, H, W = 2, 2, 16, 16
    preds = jax.random.normal(k1, (B, C, H, W), dtype=jnp.float32)
    targets = jax.random.randint(k2, (B, H, W), 0, C, dtype=jnp.int32)
    loss = asymmetric_focal_tversky_loss(preds, targets)
    jax.block_until_ready(loss)
    np.testing.assert_allclose(np.asarray(loss),
                               np.asarray(_reference(preds, targets)),
                               rtol=1e-5, atol=1e-5)

    # Case 2: exercise the core-split + ragged-tail masking paths by forcing a
    # small spatial tile (48x48 -> 18 rows, tile_rows=8 -> 3 real blocks,
    # 2 splits, one partial tile, one fully-padded tile).
    B2, H2, W2 = 2, 48, 48
    preds2 = 3.0 * jax.random.normal(k3, (B2, C, H2, W2), dtype=jnp.float32)
    targets2 = jax.random.randint(k4, (B2, H2, W2), 0, C, dtype=jnp.int32)
    loss2 = asymmetric_focal_tversky_loss(preds2, targets2, max_tile_rows=8)
    jax.block_until_ready(loss2)
    np.testing.assert_allclose(np.asarray(loss2),
                               np.asarray(_reference(preds2, targets2)),
                               rtol=1e-5, atol=1e-5)

    print("KERNEL_OK")
</pallas_src>

<mosaic_0001>
module attributes {stable_mosaic.version = 11 : i64} {
  func.func @_aft_kernel(%arg0: i32, %arg1: i32, %arg2: i32, %arg3: memref<1x2x2x128xf32, #tpu.memory_space<vmem>>, %arg4: memref<1x2x128xi32, #tpu.memory_space<vmem>>, %arg5: memref<1x1x1x128xf32, #tpu.memory_space<vmem>>, %arg6: memref<1x1x1x128xf32, #tpu.memory_space<vmem>>, %arg7: memref<1x1x1x128xf32, #tpu.memory_space<vmem>>, %arg8: memref<1x1x1x128xf32, #tpu.memory_space<vmem>>) attributes {dimension_semantics = [#tpu.dimension_semantics<parallel>, #tpu.dimension_semantics<parallel>, #tpu.dimension_semantics<arbitrary>], iteration_bounds = array<i64: 1, 2, 1>, scalar_prefetch = 0 : i64, scratch_operands = 0 : i64, tpu.core_type = #tpu.core_type<tc>, window_params = [{transform_indices = @transform_0, window_bounds = array<i64: 1, 2, 2, 128>}, {transform_indices = @transform_1, window_bounds = array<i64: 1, 2, 128>}, {transform_indices = @transform_2, window_bounds = array<i64: 1, 1, 1, 128>}, {transform_indices = @transform_3, window_bounds = array<i64: 1, 1, 1, 128>}, {transform_indices = @transform_4, window_bounds = array<i64: 1, 1, 1, 128>}, {transform_indices = @transform_5, window_bounds = array<i64: 1, 1, 1, 128>}]} {
    %c0_i32 = arith.constant 0 : i32
    %0 = arith.cmpi eq, %arg2, %c0_i32 : i32
    %1 = arith.extui %0 : i1 to i32
    %c0_i32_0 = arith.constant 0 : i32
    %2 = arith.cmpi ne, %1, %c0_i32_0 : i32
    scf.if %2 {
      %cst_52 = arith.constant 0.000000e+00 : f32
      %62 = vector.broadcast %cst_52 : f32 to vector<1x1x1x128xf32>
      %c0_53 = arith.constant 0 : index
      %c0_54 = arith.constant 0 : index
      %c0_55 = arith.constant 0 : index
      %c0_56 = arith.constant 0 : index
      %63 = vector.load %arg5[%c0_53, %c0_54, %c0_55, %c0_56] : memref<1x1x1x128xf32, #tpu.memory_space<vmem>>, vector<1x1x1x128xf32>
      tpu.vector_store %arg5[%c0_53, %c0_54, %c0_55, %c0_56], %62 {strides = array<i32>} : memref<1x1x1x128xf32, #tpu.memory_space<vmem>>, vector<1x1x1x128xf32>,
      %cst_57 = arith.constant 0.000000e+00 : f32
      %64 = vector.broadcast %cst_57 : f32 to vector<1x1x1x128xf32>
      %c0_58 = arith.constant 0 : index
      %c0_59 = arith.constant 0 : index
      %c0_60 = arith.constant 0 : index
      %c0_61 = arith.constant 0 : index
      %65 = vector.load %arg6[%c0_58, %c0_59, %c0_60, %c0_61] : memref<1x1x1x128xf32, #tpu.memory_space<vmem>>, vector<1x1x1x128xf32>
      tpu.vector_store %arg6[%c0_58, %c0_59, %c0_60, %c0_61], %64 {strides = array<i32>} : memref<1x1x1x128xf32, #tpu.memory_space<vmem>>, vector<1x1x1x128xf32>,
      %cst_62 = arith.constant 0.000000e+00 : f32
      %66 = vector.broadcast %cst_62 : f32 to vector<1x1x1x128xf32>
      %c0_63 = arith.constant 0 : index
      %c0_64 = arith.constant 0 : index
      %c0_65 = arith.constant 0 : index
      %c0_66 = arith.constant 0 : index
      %67 = vector.load %arg7[%c0_63, %c0_64, %c0_65, %c0_66] : memref<1x1x1x128xf32, #tpu.memory_space<vmem>>, vector<1x1x1x128xf32>
      tpu.vector_store %arg7[%c0_63, %c0_64, %c0_65, %c0_66], %66 {strides = array<i32>} : memref<1x1x1x128xf32, #tpu.memory_space<vmem>>, vector<1x1x1x128xf32>,
      %cst_67 = arith.constant 0.000000e+00 : f32
      %68 = vector.broadcast %cst_67 : f32 to vector<1x1x1x128xf32>
      %c0_68 = arith.constant 0 : index
      %c0_69 = arith.constant 0 : index
      %c0_70 = arith.constant 0 : index
      %c0_71 = arith.constant 0 : index
      %69 = vector.load %arg8[%c0_68, %c0_69, %c0_70, %c0_71] : memref<1x1x1x128xf32, #tpu.memory_space<vmem>>, vector<1x1x1x128xf32>
      tpu.vector_store %arg8[%c0_68, %c0_69, %c0_70, %c0_71], %68 {strides = array<i32>} : memref<1x1x1x128xf32, #tpu.memory_space<vmem>>, vector<1x1x1x128xf32>,
    } else {
    }
    %c0 = arith.constant 0 : index
    %c1 = arith.constant 1 : index
    %c0_1 = arith.constant 0 : index
    %c0_2 = arith.constant 0 : index
    %3 = vector.load %arg3[%c0, %c1, %c0_1, %c0_2] : memref<1x2x2x128xf32, #tpu.memory_space<vmem>>, vector<1x1x2x128xf32>
    %4 = vector.shape_cast %3 : vector<1x1x2x128xf32> to vector<2x128xf32>
    %c0_3 = arith.constant 0 : index
    %c0_4 = arith.constant 0 : index
    %c0_5 = arith.constant 0 : index
    %c0_6 = arith.constant 0 : index
    %5 = vector.load %arg3[%c0_3, %c0_4, %c0_5, %c0_6] : memref<1x2x2x128xf32, #tpu.memory_space<vmem>>, vector<1x1x2x128xf32>
    %6 = vector.shape_cast %5 : vector<1x1x2x128xf32> to vector<2x128xf32>
    %7 = arith.subf %4, %6 : vector<2x128xf32>
    %c0_7 = arith.constant 0 : index
    %c0_8 = arith.constant 0 : index
    %c0_9 = arith.constant 0 : index
    %8 = vector.load %arg4[%c0_7, %c0_8, %c0_9] : memref<1x2x128xi32, #tpu.memory_space<vmem>>, vector<1x2x128xi32>
    %9 = vector.shape_cast %8 : vector<1x2x128xi32> to vector<2x128xi32>
    %c1_i32 = arith.constant 1 : i32
    %10 = vector.broadcast %c1_i32 : i32 to vector<2x128xi32>
    %11 = arith.cmpi eq, %9, %10 : vector<2x128xi32>
    %12 = arith.extui %11 : vector<2x128xi1> to vector<2x128xi32>
    %13 = arith.sitofp %12 : vector<2x128xi32> to vector<2x128xf32>
    %cst = arith.constant 0.000000e+00 : f32
    %14 = vector.broadcast %cst : f32 to vector<2x128xf32>
    %15 = arith.subf %14, %7 : vector<2x128xf32>
    %16 = arith.select %11, %7, %15 : vector<2x128xi1>, vector<2x128xf32>
    %17 = math.absf %16 : vector<2x128xf32>
    %cst_10 = arith.constant 0.000000e+00 : f32
    %18 = vector.broadcast %cst_10 : f32 to vector<2x128xf32>
    %19 = arith.subf %18, %17 : vector<2x128xf32>
    %20 = math.exp %19 : vector<2x128xf32>
    %cst_11 = arith.constant 0.000000e+00 : f32
    %21 = vector.broadcast %cst_11 : f32 to vector<2x128xf32>
    %22 = arith.subf %21, %16 : vector<2x128xf32>
    %cst_12 = arith.constant 0.000000e+00 : f32
    %23 = vector.broadcast %cst_12 : f32 to vector<2x128xf32>
    %24 = arith.maximumf %22, %23 : vector<2x128xf32>
    %cst_13 = arith.constant 1.000000e+00 : f32
    %25 = vector.broadcast %cst_13 : f32 to vector<2x128xf32>
    %26 = arith.addf %25, %20 : vector<2x128xf32>
    %27 = math.log %26 : vector<2x128xf32>
    %28 = arith.addf %24, %27 : vector<2x128xf32>
    %cst_14 = arith.constant 0.000000e+00 : f32
    %29 = vector.broadcast %cst_14 : f32 to vector<2x128xf32>
    %30 = arith.subf %29, %28 : vector<2x128xf32>
    %31 = math.exp %30 : vector<2x128xf32>
    %cst_15 = arith.constant 1.000000e+00 : f32
    %32 = vector.broadcast %cst_15 : f32 to vector<2x128xf32>
    %33 = arith.subf %32, %31 : vector<2x128xf32>
    %34 = arith.mulf %33, %33 : vector<2x128xf32>
    %35 = arith.mulf %34, %28 : vector<2x128xf32>
    %36 = arith.select %11, %31, %33 : vector<2x128xi1>, vector<2x128xf32>
    %c0_16 = arith.constant 0 : index
    %c0_17 = arith.constant 0 : index
    %c0_18 = arith.constant 0 : index
    %c0_19 = arith.constant 0 : index
    %37 = vector.load %arg5[%c0_16, %c0_17, %c0_18, %c0_19] : memref<1x1x1x128xf32, #tpu.memory_space<vmem>>, vector<1x1x1x128xf32>
    %38 = arith.mulf %36, %13 : vector<2x128xf32>
    %cst_20 = arith.constant dense<0.000000e+00> : vector<128xf32>
    %39 = vector.multi_reduction <add>, %38, %cst_20 [0] : vector<2x128xf32> to vector<128xf32>
    %40 = vector.shape_cast %39 : vector<128xf32> to vector<1x128xf32>
    %41 = vector.shape_cast %40 : vector<1x128xf32> to vector<1x1x1x128xf32>
    %42 = arith.addf %37, %41 : vector<1x1x1x128xf32>
    %c0_21 = arith.constant 0 : index
    %c0_22 = arith.constant 0 : index
    %c0_23 = arith.constant 0 : index
    %c0_24 = arith.constant 0 : index
    %43 = vector.load %arg5[%c0_21, %c0_22, %c0_23, %c0_24] : memref<1x1x1x128xf32, #tpu.memory_space<vmem>>, vector<1x1x1x128xf32>
    tpu.vector_store %arg5[%c0_21, %c0_22, %c0_23, %c0_24], %42 {strides = array<i32>} : memref<1x1x1x128xf32, #tpu.memory_space<vmem>>, vector<1x1x1x128xf32>,
    %c0_25 = arith.constant 0 : index
    %c0_26 = arith.constant 0 : index
    %c0_27 = arith.constant 0 : index
    %c0_28 = arith.constant 0 : index
    %44 = vector.load %arg6[%c0_25, %c0_26, %c0_27, %c0_28] : memref<1x1x1x128xf32, #tpu.memory_space<vmem>>, vector<1x1x1x128xf32>
    %cst_29 = arith.constant dense<0.000000e+00> : vector<128xf32>
    %45 = vector.multi_reduction <add>, %13, %cst_29 [0] : vector<2x128xf32> to vector<128xf32>
    %46 = vector.shape_cast %45 : vector<128xf32> to vector<1x128xf32>
    %47 = vector.shape_cast %46 : vector<1x128xf32> to vector<1x1x1x128xf32>
    %48 = arith.addf %44, %47 : vector<1x1x1x128xf32>
    %c0_30 = arith.constant 0 : index
    %c0_31 = arith.constant 0 : index
    %c0_32 = arith.constant 0 : index
    %c0_33 = arith.constant 0 : index
    %49 = vector.load %arg6[%c0_30, %c0_31, %c0_32, %c0_33] : memref<1x1x1x128xf32, #tpu.memory_space<vmem>>, vector<1x1x1x128xf32>
    tpu.vector_store %arg6[%c0_30, %c0_31, %c0_32, %c0_33], %48 {strides = array<i32>} : memref<1x1x1x128xf32, #tpu.memory_space<vmem>>, vector<1x1x1x128xf32>,
    %c0_34 = arith.constant 0 : index
    %c0_35 = arith.constant 0 : index
    %c0_36 = arith.constant 0 : index
    %c0_37 = arith.constant 0 : index
    %50 = vector.load %arg7[%c0_34, %c0_35, %c0_36, %c0_37] : memref<1x1x1x128xf32, #tpu.memory_space<vmem>>, vector<1x1x1x128xf32>
    %cst_38 = arith.constant dense<0.000000e+00> : vector<128xf32>
    %51 = vector.multi_reduction <add>, %36, %cst_38 [0] : vector<2x128xf32> to vector<128xf32>
    %52 = vector.shape_cast %51 : vector<128xf32> to vector<1x128xf32>
    %53 = vector.shape_cast %52 : vector<1x128xf32> to vector<1x1x1x128xf32>
    %54 = arith.addf %50, %53 : vector<1x1x1x128xf32>
    %c0_39 = arith.constant 0 : index
    %c0_40 = arith.constant 0 : index
    %c0_41 = arith.constant 0 : index
    %c0_42 = arith.constant 0 : index
    %55 = vector.load %arg7[%c0_39, %c0_40, %c0_41, %c0_42] : memref<1x1x1x128xf32, #tpu.memory_space<vmem>>, vector<1x1x1x128xf32>
    tpu.vector_store %arg7[%c0_39, %c0_40, %c0_41, %c0_42], %54 {strides = array<i32>} : memref<1x1x1x128xf32, #tpu.memory_space<vmem>>, vector<1x1x1x128xf32>,
    %c0_43 = arith.constant 0 : index
    %c0_44 = arith.constant 0 : index
    %c0_45 = arith.constant 0 : index
    %c0_46 = arith.constant 0 : index
    %56 = vector.load %arg8[%c0_43, %c0_44, %c0_45, %c0_46] : memref<1x1x1x128xf32, #tpu.memory_space<vmem>>, vector<1x1x1x128xf32>
    %cst_47 = arith.constant dense<0.000000e+00> : vector<128xf32>
    %57 = vector.multi_reduction <add>, %35, %cst_47 [0] : vector<2x128xf32> to vector<128xf32>
    %58 = vector.shape_cast %57 : vector<128xf32> to vector<1x128xf32>
    %59 = vector.shape_cast %58 : vector<1x128xf32> to vector<1x1x1x128xf32>
    %60 = arith.addf %56, %59 : vector<1x1x1x128xf32>
    %c0_48 = arith.constant 0 : index
    %c0_49 = arith.constant 0 : index
    %c0_50 = arith.constant 0 : index
    %c0_51 = arith.constant 0 : index
    %61 = vector.load %arg8[%c0_48, %c0_49, %c0_50, %c0_51] : memref<1x1x1x128xf32, #tpu.memory_space<vmem>>, vector<1x1x1x128xf32>
    tpu.vector_store %arg8[%c0_48, %c0_49, %c0_50, %c0_51], %60 {strides = array<i32>} : memref<1x1x1x128xf32, #tpu.memory_space<vmem>>, vector<1x1x1x128xf32>,
    return
  }
  func.func @transform_0(%arg0: i32, %arg1: i32, %arg2: i32) -> (i32, i32, i32, i32) {
    %c1_i32 = arith.constant 1 : i32
    %0 = arith.muli %arg0, %c1_i32 : i32
    %1 = arith.addi %0, %arg2 : i32
    %c0_i32 = arith.constant 0 : i32
    %2 = arith.minsi %1, %c0_i32 : i32
    %c0_i32_0 = arith.constant 0 : i32
    %c0_i32_1 = arith.constant 0 : i32
    %c0_i32_2 = arith.constant 0 : i32
    return %arg1, %c0_i32_0, %2, %c0_i32_1 : i32, i32, i32, i32
  }
  func.func @transform_1(%arg0: i32, %arg1: i32, %arg2: i32) -> (i32, i32, i32) {
    %c1_i32 = arith.constant 1 : i32
    %0 = arith.muli %arg0, %c1_i32 : i32
    %1 = arith.addi %0, %arg2 : i32
    %c0_i32 = arith.constant 0 : i32
    %2 = arith.minsi %1, %c0_i32 : i32
    %c0_i32_0 = arith.constant 0 : i32
    %c0_i32_1 = arith.constant 0 : i32
    return %arg1, %2, %c0_i32_0 : i32, i32, i32
  }
  func.func @transform_2(%arg0: i32, %arg1: i32, %arg2: i32) -> (i32, i32, i32, i32) {
    %c0_i32 = arith.constant 0 : i32
    %c0_i32_0 = arith.constant 0 : i32
    %c0_i32_1 = arith.constant 0 : i32
    return %arg0, %arg1, %c0_i32, %c0_i32_0 : i32, i32, i32, i32
  }
  func.func @transform_3(%arg0: i32, %arg1: i32, %arg2: i32) -> (i32, i32, i32, i32) {
    %c0_i32 = arith.constant 0 : i32
    %c0_i32_0 = arith.constant 0 : i32
    %c0_i32_1 = arith.constant 0 : i32
    return %arg0, %arg1, %c0_i32, %c0_i32_0 : i32, i32, i32, i32
  }
  func.func @transform_4(%arg0: i32, %arg1: i32, %arg2: i32) -> (i32, i32, i32, i32) {
    %c0_i32 = arith.constant 0 : i32
    %c0_i32_0 = arith.constant 0 : i32
    %c0_i32_1 = arith.constant 0 : i32
    return %arg0, %arg1, %c0_i32, %c0_i32_0 : i32, i32, i32, i32
  }
  func.func @transform_5(%arg0: i32, %arg1: i32, %arg2: i32) -> (i32, i32, i32, i32) {
    %c0_i32 = arith.constant 0 : i32
    %c0_i32_0 = arith.constant 0 : i32
    %c0_i32_1 = arith.constant 0 : i32
    return %arg0, %arg1, %c0_i32, %c0_i32_0 : i32, i32, i32, i32
  }
}

</mosaic_0001>

<llo_original>
// kernel: tpu_custom_call.1
$region0: #{tpu_custom_call.1}
  #allocation0 [shape = 'u32[]', space=smem, size = 0x4, offset = 0x4, fixed_abs, tag = 'smem constant byte address 0x4 - core index']
  #allocation1 [shape = 'u32[144,128]{1,0:T(1,128)}', space=vmem, size = 0x12000, scoped, tag = 'internal scratch']
  %s0 = inlined_call_operand.hbm [shape: f32[2,2,2,128], index: 0, kind: input, shape index: {}]
  %s1 = inlined_call_operand.hbm [shape: s32[2,2,128], index: 1, kind: input, shape index: {}]
  %s2 = inlined_call_operand.hbm [shape: f32[1,2,1,128], index: 2, kind: output, shape index: {0}]
  %s3 = inlined_call_operand.hbm [shape: f32[1,2,1,128], index: 3, kind: output, shape index: {1}]
  %s4 = inlined_call_operand.hbm [shape: f32[1,2,1,128], index: 4, kind: output, shape index: {2}]
  %s5 = inlined_call_operand.hbm [shape: f32[1,2,1,128], index: 5, kind: output, shape index: {3}]
  %6 = xla_tuple %s2, %s3, %s4, %s5
  %s7 = sld [smem:[#allocation0]]
  $region77: #{tpu_custom_call.1} parent=0
    _
  %s9 = ssub.s32 1, %s7
  %s10 = scalar_select 0, %s9, %s7
  $region1: #{tpu_custom_call.1} parent=0
    #allocation2 [shape = 'u8[4096]{0}', space=vmem, size = 0x1000, scoped, tag = 'input window, operand 0']
    #allocation3 [shape = 's32[2]{0}', space=sflag, size = 0x8, scoped, tag = 'scoped memory for tpu_custom_call.1']
    #allocation4 [shape = 's32[2]{0}', space=sflag, size = 0x8, scoped, tag = 'scoped memory for tpu_custom_call.1']
    #allocation5 [shape = 'u8[2048]{0}', space=vmem, size = 0x800, scoped, tag = 'input window, operand 1']
    #allocation6 [shape = 's32[2]{0}', space=sflag, size = 0x8, scoped, tag = 'scoped memory for tpu_custom_call.1']
    #allocation7 [shape = 'u8[1024]{0}', space=vmem, size = 0x400, scoped, tag = 'output window, operand 0']
    #allocation8 [shape = 'u8[1024]{0}', space=vmem, size = 0x400, scoped, tag = 'output window, operand 1']
    #allocation9 [shape = 's32[2]{0}', space=sflag, size = 0x8, scoped, tag = 'scoped memory for tpu_custom_call.1']
    #allocation10 [shape = 'u8[1024]{0}', space=vmem, size = 0x400, scoped, tag = 'output window, operand 2']
    #allocation11 [shape = 'u8[1024]{0}', space=vmem, size = 0x400, scoped, tag = 'output window, operand 3']
    #allocation12 [shape = 's32[2]{0}', space=sflag, size = 0x8, scoped, tag = 'scoped memory for tpu_custom_call.1']
    %11 = vsyncpa [#allocation3], 0
    %s12 = scalar_lea.sflag [#allocation3], 1
    %13 = vsyncpa %s12, 0
    %14 = vsyncpa [#allocation6], 0
    %s15 = scalar_lea.sflag [#allocation6], 1
    %16 = vsyncpa %s15, 0
    %17 = vsyncpa [#allocation4], 0
    %s18 = scalar_lea.sflag [#allocation4], 1
    %19 = vsyncpa %s18, 0
    %20 = vsyncpa [#allocation9], 0
    %s21 = scalar_lea.sflag [#allocation9], 1
    %22 = vsyncpa %s21, 0
    %23 = vsyncpa [#allocation12], 0
    %s24 = scalar_lea.sflag [#allocation12], 1
    %25 = vsyncpa %s24, 0
    loop: start=0, step=1, limit=4
    $region2: #{tpu_custom_call.1} parent=1 // loop_pre_header
      _
    $region3: #{tpu_custom_call.1} parent=1 // loop_header
      %s27 = sphi 0, %s31
      %p28 = scmp.ge.s32.totalorder %s27, 4
      %s34 = sphi 0, %s53
      %s35 = sphi 0, %s49
      %s36 = sphi 0, %s45
      %s37 = sphi 0, %s34
      %s38 = sphi 0, %s35
      %s39 = sphi 0, %s36
      %s40 = sphi 0, %s37
      %s41 = sphi 0, %s38
      %s42 = sphi 0, %s39
      %s64 = sphi 0, %s66
      %s67 = sphi 0, %s64
      %s68 = sphi 0, %s67
      %s84 = sphi 0, %s68
      %s98 = sphi 0, %s100
      %s101 = sphi 0, %s98
      %s102 = sphi 0, %s101
      %s118 = sphi 0, %s102
      %s126 = sphi 0, %s128
      %s129 = sphi 0, %s126
      %s130 = sphi 0, %s129
      %s146 = sphi 0, %s130
      %s154 = sphi 0, %s156
      %s157 = sphi 0, %s154
      %s158 = sphi 0, %s157
      %s174 = sphi 0, %s158
      %s182 = sphi 0, %s184
      %s185 = sphi 0, %s182
      %s186 = sphi 0, %s185
      %s202 = sphi 0, %s186
      %s210 = sphi 0, %s212
      %s213 = sphi 0, %s210
      %s214 = sphi 0, %s213
      %s230 = sphi 0, %s214
    $region4: #{tpu_custom_call.1} parent=1 // loop_header_branch
      %30 = sbr.rel (%p28) target = $region8
    $region5: #{tpu_custom_call.1} parent=1 // loop_body
      %s32 = ssub.s32 %s27, 1
      %s33 = ssub.s32 %s27, 2
      %s43 = sadd.s32 1, %s36
      %p44 = scmp.ge.s32.totalorder %s43, 1
      %s45 = scalar_select %p44, 0, %s43
      %s46 = sadd.s32 1, %s35
      %s47 = scalar_select %p44, %s46, %s35
      %p48 = scmp.ge.s32.totalorder %s47, 2
      %s49 = scalar_select %p48, 0, %s47
      %s50 = sadd.s32 1, %s34
      %s51 = scalar_select %p48, %s50, %s34
      %p52 = scmp.ge.s32.totalorder %s51, 1
      %s53 = scalar_select %p52, 0, %s51
      %s54 = sadd.s32 %s34, %s36
      %p55 = scmp.lt.s32.totalorder %s54, 0
      %s56 = scalar_select %p55, %s54, 0
      %s57 = sadd.s32 %s53, %s45
      %p58 = scmp.lt.s32.totalorder %s57, 0
      %s59 = scalar_select %p58, %s57, 0
      %s60 = ssub.s32 %s35, %s49
      %s61 = ssub.s32 %s56, %s59
      %s62 = sor.u32 %s60, %s61
      %p63 = scmp.eq.s32.totalorder %s62, 0
      %s65 = sadd.s32 %s64, 1
      %s66 = scalar_select %p63, %s64, %s65
      %p69 = pneg %p63
      %p70 = scmp.eq.s32.totalorder %s27, 1
      %p71 = por %p69, %p70
      %p72 = scmp.ne.s32.totalorder %s64, %s67
      %p73 = scmp.eq.s32.totalorder %s27, 0
      %p74 = por %p72, %p73
      %p75 = scmp.ne.s32.totalorder %s64, %s67
      %p76 = scmp.eq.s32.totalorder %s32, 1
      %p77 = por %p75, %p76
      %p78 = scmp.ne.s32.totalorder %s67, %s68
      %p79 = scmp.eq.s32.totalorder %s32, 0
      %p80 = por %p78, %p79
      %p81 = scmp.ne.s32.totalorder %s67, %s68
      %p82 = scmp.eq.s32.totalorder %s33, 1
      %p83 = por %p81, %p82
      %p85 = scmp.ne.s32.totalorder %s68, %s84
      %p86 = scmp.eq.s32.totalorder %s33, 0
      %p87 = por %p85, %p86
      %s88 = sadd.s32 %s34, %s36
      %p89 = scmp.lt.s32.totalorder %s88, 0
      %s90 = scalar_select %p89, %s88, 0
      %s91 = sadd.s32 %s53, %s45
      %p92 = scmp.lt.s32.totalorder %s91, 0
      %s93 = scalar_select %p92, %s91, 0
      %s94 = ssub.s32 %s35, %s49
      %s95 = ssub.s32 %s90, %s93
      %s96 = sor.u32 %s94, %s95
      %p97 = scmp.eq.s32.totalorder %s96, 0
      %s99 = sadd.s32 %s98, 1
      %s100 = scalar_select %p97, %s98, %s99
      %p103 = pneg %p97
      %p104 = scmp.eq.s32.totalorder %s27, 1
      %p105 = por %p103, %p104
      %p106 = scmp.ne.s32.totalorder %s98, %s101
      %p107 = scmp.eq.s32.totalorder %s27, 0
      %p108 = por %p106, %p107
      %p109 = scmp.ne.s32.totalorder %s98, %s101
      %p110 = scmp.eq.s32.totalorder %s32, 1
      %p111 = por %p109, %p110
      %p112 = scmp.ne.s32.totalorder %s101, %s102
      %p113 = scmp.eq.s32.totalorder %s32, 0
      %p114 = por %p112, %p113
      %p115 = scmp.ne.s32.totalorder %s101, %s102
      %p116 = scmp.eq.s32.totalorder %s33, 1
      %p117 = por %p115, %p116
      %p119 = scmp.ne.s32.totalorder %s102, %s118
      %p120 = scmp.eq.s32.totalorder %s33, 0
      %p121 = por %p119, %p120
      %s122 = ssub.s32 %s34, %s53
      %s123 = ssub.s32 %s35, %s49
      %s124 = sor.u32 %s122, %s123
      %p125 = scmp.eq.s32.totalorder %s124, 0
      %s127 = sadd.s32 %s126, 1
      %s128 = scalar_select %p125, %s126, %s127
      %p131 = pneg %p125
      %p132 = scmp.eq.s32.totalorder %s27, 1
      %p133 = por %p131, %p132
      %p134 = scmp.ne.s32.totalorder %s126, %s129
      %p135 = scmp.eq.s32.totalorder %s27, 0
      %p136 = por %p134, %p135
      %p137 = scmp.ne.s32.totalorder %s126, %s129
      %p138 = scmp.eq.s32.totalorder %s32, 1
      %p139 = por %p137, %p138
      %p140 = scmp.ne.s32.totalorder %s129, %s130
      %p141 = scmp.eq.s32.totalorder %s32, 0
      %p142 = por %p140, %p141
      %p143 = scmp.ne.s32.totalorder %s129, %s130
      %p144 = scmp.eq.s32.totalorder %s33, 1
      %p145 = por %p143, %p144
      %p147 = scmp.ne.s32.totalorder %s130, %s146
      %p148 = scmp.eq.s32.totalorder %s33, 0
      %p149 = por %p147, %p148
      %s150 = ssub.s32 %s34, %s53
      %s151 = ssub.s32 %s35, %s49
      %s152 = sor.u32 %s150, %s151
      %p153 = scmp.eq.s32.totalorder %s152, 0
      %s155 = sadd.s32 %s154, 1
      %s156 = scalar_select %p153, %s154, %s155
      %p159 = pneg %p153
      %p160 = scmp.eq.s32.totalorder %s27, 1
      %p161 = por %p159, %p160
      %p162 = scmp.ne.s32.totalorder %s154, %s157
      %p163 = scmp.eq.s32.totalorder %s27, 0
      %p164 = por %p162, %p163
      %p165 = scmp.ne.s32.totalorder %s154, %s157
      %p166 = scmp.eq.s32.totalorder %s32, 1
      %p167 = por %p165, %p166
      %p168 = scmp.ne.s32.totalorder %s157, %s158
      %p169 = scmp.eq.s32.totalorder %s32, 0
      %p170 = por %p168, %p169
      %p171 = scmp.ne.s32.totalorder %s157, %s158
      %p172 = scmp.eq.s32.totalorder %s33, 1
      %p173 = por %p171, %p172
      %p175 = scmp.ne.s32.totalorder %s158, %s174
      %p176 = scmp.eq.s32.totalorder %s33, 0
      %p177 = por %p175, %p176
      %s178 = ssub.s32 %s34, %s53
      %s179 = ssub.s32 %s35, %s49
      %s180 = sor.u32 %s178, %s179
      %p181 = scmp.eq.s32.totalorder %s180, 0
      %s183 = sadd.s32 %s182, 1
      %s184 = scalar_select %p181, %s182, %s183
      %p187 = pneg %p181
      %p188 = scmp.eq.s32.totalorder %s27, 1
      %p189 = por %p187, %p188
      %p190 = scmp.ne.s32.totalorder %s182, %s185
      %p191 = scmp.eq.s32.totalorder %s27, 0
      %p192 = por %p190, %p191
      %p193 = scmp.ne.s32.totalorder %s182, %s185
      %p194 = scmp.eq.s32.totalorder %s32, 1
      %p195 = por %p193, %p194
      %p196 = scmp.ne.s32.totalorder %s185, %s186
      %p197 = scmp.eq.s32.totalorder %s32, 0
      %p198 = por %p196, %p197
      %p199 = scmp.ne.s32.totalorder %s185, %s186
      %p200 = scmp.eq.s32.totalorder %s33, 1
      %p201 = por %p199, %p200
      %p203 = scmp.ne.s32.totalorder %s186, %s202
      %p204 = scmp.eq.s32.totalorder %s33, 0
      %p205 = por %p203, %p204
      %s206 = ssub.s32 %s34, %s53
      %s207 = ssub.s32 %s35, %s49
      %s208 = sor.u32 %s206, %s207
      %p209 = scmp.eq.s32.totalorder %s208, 0
      %s211 = sadd.s32 %s210, 1
      %s212 = scalar_select %p209, %s210, %s211
      %p215 = pneg %p209
      %p216 = scmp.eq.s32.totalorder %s27, 1
      %p217 = por %p215, %p216
      %p218 = scmp.ne.s32.totalorder %s210, %s213
      %p219 = scmp.eq.s32.totalorder %s27, 0
      %p220 = por %p218, %p219
      %p221 = scmp.ne.s32.totalorder %s210, %s213
      %p222 = scmp.eq.s32.totalorder %s32, 1
      %p223 = por %p221, %p222
      %p224 = scmp.ne.s32.totalorder %s213, %s214
      %p225 = scmp.eq.s32.totalorder %s32, 0
      %p226 = por %p224, %p225
      %p227 = scmp.ne.s32.totalorder %s213, %s214
      %p228 = scmp.eq.s32.totalorder %s33, 1
      %p229 = por %p227, %p228
      %p231 = scmp.ne.s32.totalorder %s214, %s230
      %p232 = scmp.eq.s32.totalorder %s33, 0
      %p233 = por %p231, %p232
      %p234 = scmp.le.s32.totalorder 1, %s27
      %p235 = scmp.lt.s32.totalorder %s27, 3
      %p236 = pnand %p234, %p235
      %p237 = pneg %p236
      // Predicated region
      $region9: #{tpu_custom_call.1} parent=5 // pred_check
        _
      $region10: #{tpu_custom_call.1} parent=5 // pred_check_branch
        %239 = sbr.rel (%p236) target = $region12
      $region11: #{tpu_custom_call.1} parent=5 // pred_region
        %s240 = ssub.s32 %s27, 1
      $region12: #{tpu_custom_call.1} parent=5 // pred_fallthru
        _
      %p241 = scmp.lt.s32.totalorder %s27, 2
      // Predicated region
      $region13: #{tpu_custom_call.1} parent=5 // pred_check
        %p242 = pneg %p241
      $region14: #{tpu_custom_call.1} parent=5 // pred_check_branch
        %244 = sbr.rel (%p242) target = $region16
      $region15: #{tpu_custom_call.1} parent=5 // pred_region
        // Predicated region
        $region17: #{tpu_custom_call.1} parent=15 // pred_check
          %p245 = pneg %p74
        $region18: #{tpu_custom_call.1} parent=15 // pred_check_branch
          %247 = sbr.rel (%p245) target = $region20
        $region19: #{tpu_custom_call.1} parent=15 // pred_region
          %s248 = sand.u32 %s64, 1
          %s249 = scalar_lea.sflag [#allocation3], %s248
          %s250 = sand.u32 %s64, 1
          %s251 = smul.addr %s250, 4
          %s252 = scalar_lea.vmem [#allocation2], %s251
          %s253 = sadd.s32 %s34, %s36
          %p254 = scmp.lt.s32.totalorder %s253, 0
          %s255 = scalar_select %p254, %s253, 0
          %s257 = ssub.s32 64, 64
          %258 = vsyncadd %s249, %s257
          %s259 = smul.addr %s35, 2
          %s260 = sadd.s32 %s255, %s259
          %s261 = smul.addr %s260, 32
          %s262 = scalar_lea.hbm %s0, %s261
          %s263 = sshll.u32 %s252, 4
          %s264 = int_to_ptr.vmem [resolvable:$true] %s263
          %269 = dma.hbm_to_vmem [thread:$0]  %s262, 64, %s264, %s249, 32, 32, 2
        $region20: #{tpu_custom_call.1} parent=15 // pred_fallthru
          _
        // Predicated region
        $region21: #{tpu_custom_call.1} parent=15 // pred_check
          %p270 = pneg %p108
        $region22: #{tpu_custom_call.1} parent=15 // pred_check_branch
          %272 = sbr.rel (%p270) target = $region24
        $region23: #{tpu_custom_call.1} parent=15 // pred_region
          %s273 = sand.u32 %s98, 1
          %s274 = scalar_lea.sflag [#allocation6], %s273
          %s275 = sand.u32 %s98, 1
          %s276 = smul.addr %s275, 2
          %s277 = scalar_lea.vmem [#allocation5], %s276
          %s278 = sadd.s32 %s34, %s36
          %p279 = scmp.lt.s32.totalorder %s278, 0
          %s280 = scalar_select %p279, %s278, 0
          %s282 = ssub.s32 32, 32
          %283 = vsyncadd %s274, %s282
          %s284 = sadd.s32 %s280, %s35
          %s285 = smul.addr %s284, 32
          %s286 = scalar_lea.hbm %s1, %s285
          %s288 = sshll.u32 %s277, 4
          %s289 = int_to_ptr.vmem [resolvable:$true] %s288
          %291 = dma.hbm_to_vmem [thread:$0]  %s286, 32, %s289, %s274
        $region24: #{tpu_custom_call.1} parent=15 // pred_fallthru
          _
      $region16: #{tpu_custom_call.1} parent=5 // pred_fallthru
        _
      %p292 = scmp.le.s32.totalorder 1, %s27
      %p293 = scmp.lt.s32.totalorder %s27, 3
      %p294 = pnand %p292, %p293
      %p295 = pneg %p294
      // Predicated region
      $region25: #{tpu_custom_call.1} parent=5 // pred_check
        _
      $region26: #{tpu_custom_call.1} parent=5 // pred_check_branch
        %297 = sbr.rel (%p294) target = $region28
      $region27: #{tpu_custom_call.1} parent=5 // pred_region
        %s298 = ssub.s32 %s27, 1
        %s299 = sand.u32 %s67, 1
        %s300 = scalar_lea.sflag [#allocation3], %s299
        %s301 = sand.u32 %s67, 1
        %s302 = smul.addr %s301, 4
        %s303 = scalar_lea.vmem [#allocation2], %s302
        // Predicated region
        $region29: #{tpu_custom_call.1} parent=27 // pred_check
          %p304 = pneg %p80
        $region30: #{tpu_custom_call.1} parent=27 // pred_check_branch
          %306 = sbr.rel (%p304) target = $region32
        $region31: #{tpu_custom_call.1} parent=27 // pred_region
          %307 = dma.done %s300, 64
        $region32: #{tpu_custom_call.1} parent=27 // pred_fallthru
          _
        %s308 = sand.u32 %s101, 1
        %s309 = scalar_lea.sflag [#allocation6], %s308
        %s310 = sand.u32 %s101, 1
        %s311 = smul.addr %s310, 2
        %s312 = scalar_lea.vmem [#allocation5], %s311
        // Predicated region
        $region33: #{tpu_custom_call.1} parent=27 // pred_check
          %p313 = pneg %p114
        $region34: #{tpu_custom_call.1} parent=27 // pred_check_branch
          %315 = sbr.rel (%p313) target = $region36
        $region35: #{tpu_custom_call.1} parent=27 // pred_region
          %316 = dma.done %s309, 32
        $region36: #{tpu_custom_call.1} parent=27 // pred_fallthru
          _
        %s317 = sand.u32 %s67, 1
        %s318 = scalar_lea.sflag [#allocation3], %s317
        %s319 = sand.u32 %s67, 1
        %s320 = smul.addr %s319, 4
        %s321 = scalar_lea.vmem [#allocation2], %s320
        %p322 = pneg %p80
        %p323 = pneg %p77
        %s324 = sand.u32 %s101, 1
        %s325 = scalar_lea.sflag [#allocation6], %s324
        %s326 = sand.u32 %s101, 1
        %s327 = smul.addr %s326, 2
        %s328 = scalar_lea.vmem [#allocation5], %s327
        %p329 = pneg %p114
        %p330 = pneg %p111
        %p331 = pneg %p142
        %p332 = pneg %p139
        %s333 = sand.u32 %s129, 1
        %s334 = scalar_lea.sflag [#allocation4], %s333
        %s335 = sand.u32 %s129, 1
        %s336 = scalar_lea.vmem [#allocation7], %s335
        %p337 = pneg %p170
        %p338 = pneg %p167
        %s339 = sand.u32 %s32, 1
        %s340 = scalar_lea.sflag [#allocation9], %s339
        %s341 = sand.u32 %s157, 1
        %s342 = scalar_lea.vmem [#allocation8], %s341
        %p343 = pneg %p198
        %p344 = pneg %p195
        %s345 = sand.u32 %s32, 1
        %s346 = scalar_lea.sflag [#allocation9], %s345
        %s347 = sand.u32 %s185, 1
        %s348 = scalar_lea.vmem [#allocation10], %s347
        %p349 = pneg %p226
        %p350 = pneg %p223
        %s351 = sand.u32 %s213, 1
        %s352 = scalar_lea.sflag [#allocation12], %s351
        %s353 = sand.u32 %s213, 1
        %s354 = scalar_lea.vmem [#allocation11], %s353
        %s355 = sadd.s32 %s37, %s39
        %p356 = scmp.lt.s32.totalorder %s355, 0
        %s357 = scalar_select %p356, %s355, 0
        %s358 = sadd.s32 %s37, %s39
        %p359 = scmp.lt.s32.totalorder %s358, 0
        %s360 = scalar_select %p359, %s358, 0
        %p361 = scmp.eq.s32.totalorder %s39, 0
        // Predicated region
        $region37: #{tpu_custom_call.1} parent=27 // pred_check
          %p362 = pneg %p361
        $region38: #{tpu_custom_call.1} parent=27 // pred_check_branch
          %364 = sbr.rel (%p362) target = $region40
        $region39: #{tpu_custom_call.1} parent=27 // pred_region
          %365 = vst [vmem:[%s336] sm:$0x1] 0.0
          %366 = vst [vmem:[%s342] sm:$0x1] 0.0
          %367 = vst [vmem:[%s348] sm:$0x1] 0.0
          %368 = vst [vmem:[%s354] sm:$0x1] 0.0
        $region40: #{tpu_custom_call.1} parent=27 // pred_fallthru
          _
        %s369 = scalar_lea.vmem %s303, 2 [#allocation2]
        %v370 = vld [vmem:[%s369] sm:$0x3]
        %v371 = vld [vmem:[%s303] sm:$0x3]
        %v372 = vsub.f32 %v370, %v371
        %v373 = vld [vmem:[%s312] sm:$0x3]
        %vm374 = vcmp.eq.s32.totalorder %v373, 1
        %v375 = vsel %vm374, 1, 0
        %v376 = vcvt.s32.f32 %v375
        %v377 = vsub.f32 0.0, %v372
        %v378 = vsel %vm374, %v372, %v377
        %v379 = vand.u32 2147483647, %v378
        %v380 = vsub.f32 0.0, %v379
        %v381 = vmul.f32 %v380, 1.442695
        %v382 = vpow.pop %v381
        %v383 = vsub.f32 0.0, %v378
        %v384 = vmax.f32 %v383, 0.0
        %v385 = vadd.f32 %v382, 1.0
        %v386 = vlog2.pop %v385
        %v387 = vmul.f32 %v386, 0.6931472
        %v388 = vadd.f32 %v384, %v387
        %v389 = vsub.f32 0.0, %v388
        %v390 = vmul.f32 %v389, 1.442695
        %v391 = vpow.pop %v390
        %v392 = vsub.f32 1.0, %v391
        %v393 = vmul.f32 %v392, %v392
        %v394 = vmul.f32 %v393, %v388
        %v395 = vsel %vm374, %v391, %v392
        %v396 = vld [vmem:[%s336] sm:$0x1]
        %v397 = vmul.f32 %v395, %v376
        %vm398 = vcmask 1041408
        %v399 = vsel %vm398, %v397, 0.0
        %v400 = vrot.slane %v399, 4
        %v401 = vadd.f32 %v399, %v400
        %v402 = vrot.slane %v401, 2
        %v403 = vadd.f32 %v401, %v402
        %v404 = vrot.slane %v403, 1
        %v405 = vadd.f32 %v403, %v404
        %v406 = vadd.f32 %v396, %v405
        %407 = vst [vmem:[%s336] sm:$0x1] %v406
        %v408 = vld [vmem:[%s342] sm:$0x1]
        %v409 = vsel %vm398, %v376, 0.0
        %v410 = vrot.slane %v409, 4
        %v411 = vadd.f32 %v409, %v410
        %v412 = vrot.slane %v411, 2
        %v413 = vadd.f32 %v411, %v412
        %v414 = vrot.slane %v413, 1
        %v415 = vadd.f32 %v413, %v414
        %v416 = vadd.f32 %v408, %v415
        %417 = vst [vmem:[%s342] sm:$0x1] %v416
        %v418 = vld [vmem:[%s348] sm:$0x1]
        %v419 = vsel %vm398, %v395, 0.0
        %v420 = vrot.slane %v419, 4
        %v421 = vadd.f32 %v419, %v420
        %v422 = vrot.slane %v421, 2
        %v423 = vadd.f32 %v421, %v422
        %v424 = vrot.slane %v423, 1
        %v425 = vadd.f32 %v423, %v424
        %v426 = vadd.f32 %v418, %v425
        %427 = vst [vmem:[%s348] sm:$0x1] %v426
        %v428 = vld [vmem:[%s354] sm:$0x1]
        %v429 = vsel %vm398, %v394, 0.0
        %v430 = vrot.slane %v429, 4
        %v431 = vadd.f32 %v429, %v430
        %v432 = vrot.slane %v431, 2
        %v433 = vadd.f32 %v431, %v432
        %v434 = vrot.slane %v433, 1
        %v435 = vadd.f32 %v433, %v434
        %v436 = vadd.f32 %v428, %v435
        %437 = vst [vmem:[%s354] sm:$0x1] %v436
        %s438 = sand.u32 %s129, 1
        %s439 = scalar_lea.sflag [#allocation4], %s438
        %s440 = sand.u32 %s129, 1
        %s441 = scalar_lea.vmem [#allocation7], %s440
        %s442 = sand.u32 %s32, 1
        %s443 = scalar_lea.sflag [#allocation9], %s442
        %s444 = sand.u32 %s157, 1
        %s445 = scalar_lea.vmem [#allocation8], %s444
        %s446 = sand.u32 %s32, 1
        %s447 = scalar_lea.sflag [#allocation9], %s446
        %s448 = sand.u32 %s185, 1
        %s449 = scalar_lea.vmem [#allocation10], %s448
        %s450 = sand.u32 %s213, 1
        %s451 = scalar_lea.sflag [#allocation12], %s450
        %s452 = sand.u32 %s213, 1
        %s453 = scalar_lea.vmem [#allocation11], %s452
        // Predicated region
        $region41: #{tpu_custom_call.1} parent=27 // pred_check
          %p454 = pneg %p139
        $region42: #{tpu_custom_call.1} parent=27 // pred_check_branch
          %456 = sbr.rel (%p454) target = $region44
        $region43: #{tpu_custom_call.1} parent=27 // pred_region
          %s458 = ssub.s32 16, 16
          %459 = vsyncadd %s439, %s458
          %s460 = smul.addr %s37, 2
          %s461 = sadd.s32 %s38, %s460
          %s462 = smul.addr %s461, 16
          %s463 = scalar_lea.hbm %s2, %s462
          %s465 = sshll.u32 %s441, 4
          %s466 = int_to_ptr.vmem [resolvable:$true] %s465
          %468 = dma.vmem_to_hbm [thread:$0]  %s466, 16, %s463, %s439
        $region44: #{tpu_custom_call.1} parent=27 // pred_fallthru
          _
        // Predicated region
        $region45: #{tpu_custom_call.1} parent=27 // pred_check
          %p469 = pneg %p167
        $region46: #{tpu_custom_call.1} parent=27 // pred_check_branch
          %471 = sbr.rel (%p469) target = $region48
        $region47: #{tpu_custom_call.1} parent=27 // pred_region
          %s473 = ssub.s32 16, 16
          %474 = vsyncadd %s443, %s473
          %s475 = smul.addr %s37, 2
          %s476 = sadd.s32 %s38, %s475
          %s477 = smul.addr %s476, 16
          %s478 = scalar_lea.hbm %s3, %s477
          %s480 = sshll.u32 %s445, 4
          %s481 = int_to_ptr.vmem [resolvable:$true] %s480
          %483 = dma.vmem_to_hbm [thread:$0]  %s481, 16, %s478, %s443
        $region48: #{tpu_custom_call.1} parent=27 // pred_fallthru
          _
        // Predicated region
        $region49: #{tpu_custom_call.1} parent=27 // pred_check
          %p484 = pneg %p195
        $region50: #{tpu_custom_call.1} parent=27 // pred_check_branch
          %486 = sbr.rel (%p484) target = $region52
        $region51: #{tpu_custom_call.1} parent=27 // pred_region
          %s488 = ssub.s32 16, 16
          %489 = vsyncadd %s447, %s488
          %s490 = smul.addr %s37, 2
          %s491 = sadd.s32 %s38, %s490
          %s492 = smul.addr %s491, 16
          %s493 = scalar_lea.hbm %s4, %s492
          %s495 = sshll.u32 %s449, 4
          %s496 = int_to_ptr.vmem [resolvable:$true] %s495
          %498 = dma.vmem_to_hbm [thread:$0]  %s496, 16, %s493, %s447
        $region52: #{tpu_custom_call.1} parent=27 // pred_fallthru
          _
        // Predicated region
        $region53: #{tpu_custom_call.1} parent=27 // pred_check
          %p499 = pneg %p223
        $region54: #{tpu_custom_call.1} parent=27 // pred_check_branch
          %501 = sbr.rel (%p499) target = $region56
        $region55: #{tpu_custom_call.1} parent=27 // pred_region
          %s503 = ssub.s32 16, 16
          %504 = vsyncadd %s451, %s503
          %s505 = smul.addr %s37, 2
          %s506 = sadd.s32 %s38, %s505
          %s507 = smul.addr %s506, 16
          %s508 = scalar_lea.hbm %s5, %s507
          %s510 = sshll.u32 %s453, 4
          %s511 = int_to_ptr.vmem [resolvable:$true] %s510
          %513 = dma.vmem_to_hbm [thread:$0]  %s511, 16, %s508, %s451
        $region56: #{tpu_custom_call.1} parent=27 // pred_fallthru
          _
      $region28: #{tpu_custom_call.1} parent=5 // pred_fallthru
        _
      %p514 = scmp.le.s32.totalorder 2, %s27
      // Predicated region
      $region57: #{tpu_custom_call.1} parent=5 // pred_check
        %p515 = pneg %p514
      $region58: #{tpu_custom_call.1} parent=5 // pred_check_branch
        %517 = sbr.rel (%p515) target = $region60
      $region59: #{tpu_custom_call.1} parent=5 // pred_region
        %s518 = ssub.s32 %s27, 2
        // Predicated region
        $region61: #{tpu_custom_call.1} parent=59 // pred_check
          %p519 = pneg %p145
        $region62: #{tpu_custom_call.1} parent=59 // pred_check_branch
          %521 = sbr.rel (%p519) target = $region64
        $region63: #{tpu_custom_call.1} parent=59 // pred_region
          %s522 = sand.u32 %s130, 1
          %s523 = scalar_lea.sflag [#allocation4], %s522
          %s524 = sand.u32 %s130, 1
          %s525 = scalar_lea.vmem [#allocation7], %s524
          %526 = dma.done %s523, 16
        $region64: #{tpu_custom_call.1} parent=59 // pred_fallthru
          _
        // Predicated region
        $region65: #{tpu_custom_call.1} parent=59 // pred_check
          %p527 = pneg %p173
        $region66: #{tpu_custom_call.1} parent=59 // pred_check_branch
          %529 = sbr.rel (%p527) target = $region68
        $region67: #{tpu_custom_call.1} parent=59 // pred_region
          %s530 = sand.u32 %s33, 1
          %s531 = scalar_lea.sflag [#allocation9], %s530
          %s532 = sand.u32 %s158, 1
          %s533 = scalar_lea.vmem [#allocation8], %s532
          %534 = dma.done %s531, 16
        $region68: #{tpu_custom_call.1} parent=59 // pred_fallthru
          _
        // Predicated region
        $region69: #{tpu_custom_call.1} parent=59 // pred_check
          %p535 = pneg %p201
        $region70: #{tpu_custom_call.1} parent=59 // pred_check_branch
          %537 = sbr.rel (%p535) target = $region72
        $region71: #{tpu_custom_call.1} parent=59 // pred_region
          %s538 = sand.u32 %s33, 1
          %s539 = scalar_lea.sflag [#allocation9], %s538
          %s540 = sand.u32 %s186, 1
          %s541 = scalar_lea.vmem [#allocation10], %s540
          %542 = dma.done %s539, 16
        $region72: #{tpu_custom_call.1} parent=59 // pred_fallthru
          _
        // Predicated region
        $region73: #{tpu_custom_call.1} parent=59 // pred_check
          %p543 = pneg %p229
        $region74: #{tpu_custom_call.1} parent=59 // pred_check_branch
          %545 = sbr.rel (%p543) target = $region76
        $region75: #{tpu_custom_call.1} parent=59 // pred_region
          %s546 = sand.u32 %s214, 1
          %s547 = scalar_lea.sflag [#allocation12], %s546
          %s548 = sand.u32 %s214, 1
          %s549 = scalar_lea.vmem [#allocation11], %s548
          %550 = dma.done %s547, 16
        $region76: #{tpu_custom_call.1} parent=59 // pred_fallthru
          _
      $region60: #{tpu_custom_call.1} parent=5 // pred_fallthru
        _
    $region6: #{tpu_custom_call.1} parent=1 // loop_footer
      %s31 = sadd.s32 1, %s27
    $region7: #{tpu_custom_call.1} parent=1 // loop_footer_branch
      %26 = sbr.rel target = $region3
    $region8: #{tpu_custom_call.1} parent=1 // loop_exit
      _
    %551 = vsyncpa [#allocation3], 1
    %s552 = scalar_lea.sflag [#allocation3], 1
    %553 = vsyncpa %s552, 1
    %554 = vsyncpa [#allocation6], 1
    %s555 = scalar_lea.sflag [#allocation6], 1
    %556 = vsyncpa %s555, 1
    %557 = vsyncpa [#allocation4], 1
    %s558 = scalar_lea.sflag [#allocation4], 1
    %559 = vsyncpa %s558, 1
    %560 = vsyncpa [#allocation9], 1
    %s561 = scalar_lea.sflag [#allocation9], 1
    %562 = vsyncpa %s561, 1
    %563 = vsyncpa [#allocation12], 1
    %s564 = scalar_lea.sflag [#allocation12], 1
    %565 = vsyncpa %s564, 1

</llo_original>
